<compile_context>
chip_gen: v7x
topology: tpu7x:2x2x1
jax: 0.10.0
libtpu: 0.0.40
codegen_flags: <defaults>
</compile_context>

<pallas_src>
import functools

import jax
import jax.numpy as jnp
from jax.experimental import pallas as pl
from jax.experimental.pallas import tpu as pltpu


def _make_focal_loss_kernel(gamma, n_total, tile_n):
    gamma = float(gamma)
    if gamma == int(gamma) and 0 <= int(gamma) <= 8:
        _ig = int(gamma)

        def _modulate(x):
            # integer power by repeated multiply (avoids exp(log(.)) on the EUP)
            r = jnp.float32(1.0)
            for _ in range(_ig):
                r = r * x
            return r
    else:

        def _modulate(x):
            return x ** jnp.float32(gamma)

    def kernel(logits_ref, targets_ref, out_ref, acc_ref):
        i = pl.program_id(0)

        @pl.when(i == 0)
        def _init():
            acc_ref[0, 0] = jnp.float32(0.0)

        # Compute happens in f32 regardless of HBM storage dtype (bf16 inputs
        # are cast on load; keeps v5e happy, which has no bf16 VPU/EUP).
        logits = logits_ref[...].astype(jnp.float32)          # (tile_n, C)
        tgt = targets_ref[...]                                 # (tile_n, 1) int32
        tn, c = logits.shape

        # Numerically-stable log-softmax.  The per-row max cancels between the
        # logsumexp term and the target-logit term, so we only need `shifted`.
        row_max = jnp.max(logits, axis=-1, keepdims=True)      # (tile_n, 1)
        shifted = logits - row_max                              # (tile_n, C)
        lse = jnp.log(jnp.sum(jnp.exp(shifted), axis=-1, keepdims=True))

        col = jax.lax.broadcasted_iota(jnp.int32, (tn, c), 1)
        tgt_shifted = jnp.sum(
            jnp.where(col == tgt, shifted, 0.0), axis=-1, keepdims=True
        )                                                       # (tile_n, 1)
        ce_per_sample = lse - tgt_shifted                        # (tile_n, 1)

        # Mask rows past N (partial last tile) so they contribute 0.
        row = jax.lax.broadcasted_iota(jnp.int32, (tn, 1), 0) + i * tile_n
        ce_per_sample = jnp.where(row < n_total, ce_per_sample, 0.0)

        acc_ref[0, 0] += jnp.sum(ce_per_sample)

        @pl.when(i == pl.num_programs(0) - 1)
        def _finalize():
            ce = acc_ref[0, 0] * jnp.float32(1.0 / n_total)
            pt = jnp.exp(-ce)
            out_ref[0, 0] = _modulate(1.0 - pt) * ce

    return kernel


def _pick_tile_n(n, c, itemsize):
    """Pick a sublane-aligned tile of ~2 MiB so double-buffering fits the
    default scoped VMEM on every generation (incl. v7x's 64 MiB physical)."""
    target_bytes = 2 << 20
    tile = target_bytes // max(1, c * itemsize)
    tile = max(8, min(1024, tile))
    tile = (tile // 8) * 8
    if tile >= n:
        return n            # whole-array block (always a legal block shape)
    return tile             # multiple of 8 -> legal even if it doesn't divide N


def focal_loss(inputs, targets, gamma=2.0, tile_n=None):
    """inputs: (N, C) float logits, targets: (N,) int class indices."""
    n, c = inputs.shape
    targets2d = targets.astype(jnp.int32).reshape(n, 1)

    if tile_n is None:
        tile_n = _pick_tile_n(n, c, jnp.dtype(inputs.dtype).itemsize)
    tile_n = min(tile_n, n)
    if tile_n != n and tile_n % 8 != 0:
        raise ValueError("tile_n must be a multiple of 8 (or equal to N)")

    grid = (pl.cdiv(n, tile_n),)

    out = pl.pallas_call(
        _make_focal_loss_kernel(float(gamma), n, tile_n),
        out_shape=jax.ShapeDtypeStruct((1, 1), jnp.float32),
        grid=grid,
        in_specs=[
            pl.BlockSpec((tile_n, c), lambda i: (i, 0)),
            pl.BlockSpec((tile_n, 1), lambda i: (i, 0)),
        ],
        out_specs=pl.BlockSpec(memory_space=pltpu.SMEM),
        scratch_shapes=[pltpu.SMEM((1, 1), jnp.float32)],
        compiler_params=pltpu.CompilerParams(
            dimension_semantics=("arbitrary",),
            vmem_limit_bytes=32 << 20,
        ),
    )(inputs, targets2d)
    return out[0, 0]


def _reference_focal_loss(inputs, targets, gamma=2.0):
    # pure-JAX reference for sanity checking
    logits = inputs.astype(jnp.float32)
    logz = jax.scipy.special.logsumexp(logits, axis=-1)
    tgt_logit = jnp.take_along_axis(
        logits, targets.astype(jnp.int32)[:, None], axis=-1
    )[:, 0]
    ce = jnp.mean(logz - tgt_logit)
    pt = jnp.exp(-ce)
    return (1.0 - pt) ** gamma * ce


if __name__ == "__main__":
    key = jax.random.PRNGKey(0)
    k1, k2 = jax.random.split(key)

    N, C = 64, 32  # small shapes: 64 samples, 32 classes
    inputs = jax.random.normal(k1, (N, C), dtype=jnp.float32)
    targets = jax.random.randint(k2, (N,), 0, C, dtype=jnp.int32)

    ref = _reference_focal_loss(inputs, targets, gamma=2.0)

    # 1) default (auto tile -> single block here)
    out_default = focal_loss(inputs, targets, gamma=2.0)
    jax.block_until_ready(out_default)
    assert jnp.allclose(out_default, ref, rtol=1e-5, atol=1e-5), (out_default, ref)

    # 2) forced small tile to exercise the grid, SMEM accumulation and the
    #    partial-last-tile masking path (64 = 24 + 24 + 16).
    out_tiled = focal_loss(inputs, targets, gamma=2.0, tile_n=24)
    jax.block_until_ready(out_tiled)
    assert jnp.allclose(out_tiled, ref, rtol=1e-5, atol=1e-5), (out_tiled, ref)

    print("KERNEL_OK")
</pallas_src>

<mosaic_0001>
module attributes {stable_mosaic.version = 11 : i64} {
  func.func @kernel(%arg0: i32, %arg1: memref<64x32xf32, #tpu.memory_space<vmem>>, %arg2: memref<64x1xi32, #tpu.memory_space<vmem>>, %arg3: memref<1x1xf32, #tpu.memory_space<smem>>, %arg4: memref<1x1xf32, #tpu.memory_space<smem>>) attributes {dimension_semantics = [#tpu.dimension_semantics<arbitrary>], iteration_bounds = array<i64: 1>, scalar_prefetch = 0 : i64, scratch_operands = 1 : i64, tpu.core_type = #tpu.core_type<tc>, window_params = [{transform_indices = @transform_0, window_bounds = array<i64: 64, 32>}, {transform_indices = @transform_1, window_bounds = array<i64: 64, 1>}, {transform_indices = @transform_2, window_bounds = array<i64: 1, 1>}]} {
    %c0_i32 = arith.constant 0 : i32
    %0 = arith.cmpi eq, %arg0, %c0_i32 : i32
    %1 = arith.extui %0 : i1 to i32
    %c0_i32_0 = arith.constant 0 : i32
    %2 = arith.cmpi ne, %1, %c0_i32_0 : i32
    scf.if %2 {
      %cst_16 = arith.constant 0.000000e+00 : f32
      %c0_17 = arith.constant 0 : index
      %c0_18 = arith.constant 0 : index
      %39 = memref.load %arg4[%c0_17, %c0_18] : memref<1x1xf32, #tpu.memory_space<smem>>
      memref.store %cst_16, %arg4[%c0_17, %c0_18] : memref<1x1xf32, #tpu.memory_space<smem>>
    } else {
    }
    %c0 = arith.constant 0 : index
    %c0_1 = arith.constant 0 : index
    %3 = vector.load %arg1[%c0, %c0_1] : memref<64x32xf32, #tpu.memory_space<vmem>>, vector<64x32xf32>
    %c0_2 = arith.constant 0 : index
    %c0_3 = arith.constant 0 : index
    %4 = vector.load %arg2[%c0_2, %c0_3] : memref<64x1xi32, #tpu.memory_space<vmem>>, vector<64x1xi32>
    %cst = arith.constant dense<0xFF800000> : vector<64xf32>
    %5 = vector.multi_reduction <maximumf>, %3, %cst [1] : vector<64x32xf32> to vector<64xf32>
    %6 = vector.shape_cast %5 : vector<64xf32> to vector<64x1xf32>
    %7 = vector.broadcast %6 : vector<64x1xf32> to vector<64x32xf32>
    %8 = arith.subf %3, %7 : vector<64x32xf32>
    %9 = math.exp %8 : vector<64x32xf32>
    %cst_4 = arith.constant dense<0.000000e+00> : vector<64xf32>
    %10 = vector.multi_reduction <add>, %9, %cst_4 [1] : vector<64x32xf32> to vector<64xf32>
    %11 = vector.shape_cast %10 : vector<64xf32> to vector<64x1xf32>
    %12 = math.log %11 : vector<64x1xf32>
    %13 = tpu.iota {dimensions = array<i32: 1>} : vector<64x32xi32>
    %14 = vector.broadcast %4 : vector<64x1xi32> to vector<64x32xi32>
    %15 = arith.cmpi eq, %13, %14 : vector<64x32xi32>
    %cst_5 = arith.constant 0.000000e+00 : f32
    %16 = vector.broadcast %cst_5 : f32 to vector<64x32xf32>
    %17 = arith.select %15, %8, %16 : vector<64x32xi1>, vector<64x32xf32>
    %cst_6 = arith.constant dense<0.000000e+00> : vector<64xf32>
    %18 = vector.multi_reduction <add>, %17, %cst_6 [1] : vector<64x32xf32> to vector<64xf32>
    %19 = vector.shape_cast %18 : vector<64xf32> to vector<64x1xf32>
    %20 = arith.subf %12, %19 : vector<64x1xf32>
    %21 = tpu.iota {dimensions = array<i32: 0>} : vector<64x1xi32>
    %c64_i32 = arith.constant 64 : i32
    %22 = arith.muli %arg0, %c64_i32 : i32
    %23 = vector.broadcast %22 : i32 to vector<64x1xi32>
    %24 = arith.addi %21, %23 : vector<64x1xi32>
    %c64_i32_7 = arith.constant 64 : i32
    %25 = vector.broadcast %c64_i32_7 : i32 to vector<64x1xi32>
    %26 = arith.cmpi slt, %24, %25 : vector<64x1xi32>
    %cst_8 = arith.constant 0.000000e+00 : f32
    %27 = vector.broadcast %cst_8 : f32 to vector<64x1xf32>
    %28 = arith.select %26, %20, %27 : vector<64x1xi1>, vector<64x1xf32>
    %c0_9 = arith.constant 0 : index
    %c0_10 = arith.constant 0 : index
    %29 = memref.load %arg4[%c0_9, %c0_10] : memref<1x1xf32, #tpu.memory_space<smem>>
    %30 = vector.shape_cast %28 : vector<64x1xf32> to vector<1x64x1xf32>
    %cst_11 = arith.constant dense<0.000000e+00> : vector<1xf32>
    %31 = vector.multi_reduction <add>, %30, %cst_11 [1, 2] : vector<1x64x1xf32> to vector<1xf32>
    %32 = vector.shape_cast %31 : vector<1xf32> to vector<1x1x1xf32>
    %33 = vector.extract %32[0, 0, 0] : f32 from vector<1x1x1xf32>
    %34 = arith.addf %29, %33 : f32
    %c0_12 = arith.constant 0 : index
    %c0_13 = arith.constant 0 : index
    %35 = memref.load %arg4[%c0_12, %c0_13] : memref<1x1xf32, #tpu.memory_space<smem>>
    memref.store %34, %arg4[%c0_12, %c0_13] : memref<1x1xf32, #tpu.memory_space<smem>>
    %c0_i32_14 = arith.constant 0 : i32
    %36 = arith.cmpi eq, %arg0, %c0_i32_14 : i32
    %37 = arith.extui %36 : i1 to i32
    %c0_i32_15 = arith.constant 0 : i32
    %38 = arith.cmpi ne, %37, %c0_i32_15 : i32
    scf.if %38 {
      %c0_16 = arith.constant 0 : index
      %c0_17 = arith.constant 0 : index
      %39 = memref.load %arg4[%c0_16, %c0_17] : memref<1x1xf32, #tpu.memory_space<smem>>
      %cst_18 = arith.constant 1.562500e-02 : f32
      %40 = arith.mulf %39, %cst_18 : f32
      %cst_19 = arith.constant 0.000000e+00 : f32
      %41 = arith.subf %cst_19, %40 : f32
      %42 = math.exp %41 : f32
      %cst_20 = arith.constant 1.000000e+00 : f32
      %43 = arith.subf %cst_20, %42 : f32
      %cst_21 = arith.constant 1.000000e+00 : f32
      %44 = arith.mulf %cst_21, %43 : f32
      %45 = arith.mulf %44, %43 : f32
      %46 = arith.mulf %45, %40 : f32
      %c0_22 = arith.constant 0 : index
      %c0_23 = arith.constant 0 : index
      %47 = memref.load %arg3[%c0_22, %c0_23] : memref<1x1xf32, #tpu.memory_space<smem>>
      memref.store %46, %arg3[%c0_22, %c0_23] : memref<1x1xf32, #tpu.memory_space<smem>>
    } else {
    }
    return
  }
  func.func @transform_0(%arg0: i32) -> (i32, i32) {
    %c0_i32 = arith.constant 0 : i32
    %c0_i32_0 = arith.constant 0 : i32
    return %arg0, %c0_i32 : i32, i32
  }
  func.func @transform_1(%arg0: i32) -> (i32, i32) {
    %c0_i32 = arith.constant 0 : i32
    %c0_i32_0 = arith.constant 0 : i32
    return %arg0, %c0_i32 : i32, i32
  }
  func.func @transform_2(%arg0: i32) -> (i32, i32) {
    %c0_i32 = arith.constant 0 : i32
    %c0_i32_0 = arith.constant 0 : i32
    %c0_i32_1 = arith.constant 0 : i32
    return %c0_i32, %c0_i32_0 : i32, i32
  }
}

</mosaic_0001>

<llo_original>
// kernel: tpu_custom_call.1
$region0: #{tpu_custom_call.1}
  #allocation0 [shape = 'u32[]', space=smem, size = 0x4, offset = 0x4, fixed_abs, tag = 'smem constant byte address 0x4 - core index']
  #allocation1 [shape = 'u32[144,128]{1,0:T(1,128)}', space=vmem, size = 0x12000, scoped, tag = 'internal scratch']
  #allocation2 [shape = 'f32[1,1]{1,0:T(1,128)}', space=smem, size = 0x200, scoped, tag = 'scratch operand']
  %s0 = inlined_call_operand.vmem [shape: f32[64,32], index: 0, kind: input, shape index: {}]
  %s1 = inlined_call_operand.vmem [shape: s32[64,1], index: 1, kind: input, shape index: {}]
  %s2 = inlined_call_operand.hbm [shape: f32[1,1], index: 2, kind: output, shape index: {}]
  %s3 = sld [smem:[#allocation0]]
  $region26: #{tpu_custom_call.1} parent=0
    _
  %s5 = ssub.s32 1, %s3
  %s6 = scalar_select 0, %s5, %s3
  $region1: #{tpu_custom_call.1} parent=0
    #allocation3 [shape = 'u8[512]{0}', space=smem, size = 0x200, scoped, tag = 'output window, operand 0, single buffered']
    #allocation4 [shape = 's32[1]{0}', space=sflag, size = 0x4, scoped, tag = 'scoped memory for tpu_custom_call.1']
    %7 = vsyncpa [#allocation4], 0
    // Predicated region
    $region2: #{tpu_custom_call.1} parent=1 // pred_check
      _
    $region3: #{tpu_custom_call.1} parent=1 // pred_check_branch
      %9 = sbr.rel (0) target = $region5
    $region4: #{tpu_custom_call.1} parent=1 // pred_region
      _
    $region5: #{tpu_custom_call.1} parent=1 // pred_fallthru
      _
    // Predicated region
    $region6: #{tpu_custom_call.1} parent=1 // pred_check
      _
    $region7: #{tpu_custom_call.1} parent=1 // pred_check_branch
      %11 = sbr.rel (0) target = $region9
    $region8: #{tpu_custom_call.1} parent=1 // pred_region
      _
    $region9: #{tpu_custom_call.1} parent=1 // pred_fallthru
      _
    %p12 = scmp.eq.s32.totalorder 0, 0
    // Predicated region
    $region10: #{tpu_custom_call.1} parent=1 // pred_check
      %p13 = pneg %p12
    $region11: #{tpu_custom_call.1} parent=1 // pred_check_branch
      %15 = sbr.rel (%p13) target = $region13
    $region12: #{tpu_custom_call.1} parent=1 // pred_region
      %s16 = scalar_lea.smem [#allocation2], 0
      %17 = sst [smem:[%s16]] 0.0
    $region13: #{tpu_custom_call.1} parent=1 // pred_fallthru
      _
    %v18 = vld [vmem:[%s0] sm:$0xff]
    %v19 = vld [vmem:[%s0 + $0x8] sm:$0xff]
    %v20 = vld [vmem:[%s0 + $0x10] sm:$0xff]
    %v21 = vld [vmem:[%s0 + $0x18] sm:$0xff]
    %v22 = vld [vmem:[%s0 + $0x20] sm:$0xff]
    %v23 = vld [vmem:[%s0 + $0x28] sm:$0xff]
    %v24 = vld [vmem:[%s0 + $0x30] sm:$0xff]
    %v25 = vld [vmem:[%s0 + $0x38] sm:$0xff]
    %v26 = vld [vmem:[%s1] sm:$0xff]
    %v27 = vld [vmem:[%s1 + $0x8] sm:$0xff]
    %v28 = vld [vmem:[%s1 + $0x10] sm:$0xff]
    %v29 = vld [vmem:[%s1 + $0x18] sm:$0xff]
    %v30 = vld [vmem:[%s1 + $0x20] sm:$0xff]
    %v31 = vld [vmem:[%s1 + $0x28] sm:$0xff]
    %v32 = vld [vmem:[%s1 + $0x30] sm:$0xff]
    %v33 = vld [vmem:[%s1 + $0x38] sm:$0xff]
    %vm34 = vcmask 261120
    %v35 = vsel %vm34, %v18, -inf
    %36 = vmax.xlane.f32.xlu0 %v35
    %v37 = vpop.xlane.xlu0 %36
    %v38 = vsel %vm34, %v19, -inf
    %39 = vmax.xlane.f32.xlu0 %v38
    %v40 = vpop.xlane.xlu0 %39
    %v41 = vsel %vm34, %v20, -inf
    %42 = vmax.xlane.f32.xlu0 %v41
    %v43 = vpop.xlane.xlu0 %42
    %v44 = vsel %vm34, %v21, -inf
    %45 = vmax.xlane.f32.xlu0 %v44
    %v46 = vpop.xlane.xlu0 %45
    %v47 = vsel %vm34, %v22, -inf
    %48 = vmax.xlane.f32.xlu0 %v47
    %v49 = vpop.xlane.xlu0 %48
    %v50 = vsel %vm34, %v23, -inf
    %51 = vmax.xlane.f32.xlu0 %v50
    %v52 = vpop.xlane.xlu0 %51
    %v53 = vsel %vm34, %v24, -inf
    %54 = vmax.xlane.f32.xlu0 %v53
    %v55 = vpop.xlane.xlu0 %54
    %v56 = vsel %vm34, %v25, -inf
    %57 = vmax.xlane.f32.xlu0 %v56
    %v58 = vpop.xlane.xlu0 %57
    %v59 = vsub.f32 %v18, %v37
    %v60 = vsub.f32 %v19, %v40
    %v61 = vsub.f32 %v20, %v43
    %v62 = vsub.f32 %v21, %v46
    %v63 = vsub.f32 %v22, %v49
    %v64 = vsub.f32 %v23, %v52
    %v65 = vsub.f32 %v24, %v55
    %v66 = vsub.f32 %v25, %v58
    %v67 = vmul.f32 %v59, 1.442695
    %v68 = vpow.pop %v67
    %v69 = vmul.f32 %v60, 1.442695
    %v70 = vpow.pop %v69
    %v71 = vmul.f32 %v61, 1.442695
    %v72 = vpow.pop %v71
    %v73 = vmul.f32 %v62, 1.442695
    %v74 = vpow.pop %v73
    %v75 = vmul.f32 %v63, 1.442695
    %v76 = vpow.pop %v75
    %v77 = vmul.f32 %v64, 1.442695
    %v78 = vpow.pop %v77
    %v79 = vmul.f32 %v65, 1.442695
    %v80 = vpow.pop %v79
    %v81 = vmul.f32 %v66, 1.442695
    %v82 = vpow.pop %v81
    %v83 = vsel %vm34, %v68, 0.0
    %84 = vadd.xlane.f32.xlu0 %v83
    %v85 = vpop.xlane.xlu0 %84
    %v86 = vsel %vm34, %v70, 0.0
    %87 = vadd.xlane.f32.xlu0 %v86
    %v88 = vpop.xlane.xlu0 %87
    %v89 = vsel %vm34, %v72, 0.0
    %90 = vadd.xlane.f32.xlu0 %v89
    %v91 = vpop.xlane.xlu0 %90
    %v92 = vsel %vm34, %v74, 0.0
    %93 = vadd.xlane.f32.xlu0 %v92
    %v94 = vpop.xlane.xlu0 %93
    %v95 = vsel %vm34, %v76, 0.0
    %96 = vadd.xlane.f32.xlu0 %v95
    %v97 = vpop.xlane.xlu0 %96
    %v98 = vsel %vm34, %v78, 0.0
    %99 = vadd.xlane.f32.xlu0 %v98
    %v100 = vpop.xlane.xlu0 %99
    %v101 = vsel %vm34, %v80, 0.0
    %102 = vadd.xlane.f32.xlu0 %v101
    %v103 = vpop.xlane.xlu0 %102
    %v104 = vsel %vm34, %v82, 0.0
    %105 = vadd.xlane.f32.xlu0 %v104
    %v106 = vpop.xlane.xlu0 %105
    %v107 = vlog2.pop %v85
    %v108 = vmul.f32 %v107, 0.6931472
    %v109 = vlog2.pop %v88
    %v110 = vmul.f32 %v109, 0.6931472
    %v111 = vlog2.pop %v91
    %v112 = vmul.f32 %v111, 0.6931472
    %v113 = vlog2.pop %v94
    %v114 = vmul.f32 %v113, 0.6931472
    %v115 = vlog2.pop %v97
    %v116 = vmul.f32 %v115, 0.6931472
    %v117 = vlog2.pop %v100
    %v118 = vmul.f32 %v117, 0.6931472
    %v119 = vlog2.pop %v103
    %v120 = vmul.f32 %v119, 0.6931472
    %v121 = vlog2.pop %v106
    %v122 = vmul.f32 %v121, 0.6931472
    %v123 = vlaneseq
    %v124 = vand.u32 %v123, 127
    %125 = vset.pattern.permute.xlu0 0
    %126 = vperm.xlu0 %125, %v26
    %v127 = vpop.permute.xlu0 %126
    %128 = vset.pattern.permute.xlu0 0
    %129 = vperm.xlu0 %128, %v27
    %v130 = vpop.permute.xlu0 %129
    %131 = vset.pattern.permute.xlu0 0
    %132 = vperm.xlu0 %131, %v28
    %v133 = vpop.permute.xlu0 %132
    %134 = vset.pattern.permute.xlu0 0
    %135 = vperm.xlu0 %134, %v29
    %v136 = vpop.permute.xlu0 %135
    %137 = vset.pattern.permute.xlu0 0
    %138 = vperm.xlu0 %137, %v30
    %v139 = vpop.permute.xlu0 %138
    %140 = vset.pattern.permute.xlu0 0
    %141 = vperm.xlu0 %140, %v31
    %v142 = vpop.permute.xlu0 %141
    %143 = vset.pattern.permute.xlu0 0
    %144 = vperm.xlu0 %143, %v32
    %v145 = vpop.permute.xlu0 %144
    %146 = vset.pattern.permute.xlu0 0
    %147 = vperm.xlu0 %146, %v33
    %v148 = vpop.permute.xlu0 %147
    %vm149 = vcmp.eq.s32.totalorder %v124, %v127
    %vm150 = vcmp.eq.s32.totalorder %v124, %v130
    %vm151 = vcmp.eq.s32.totalorder %v124, %v133
    %vm152 = vcmp.eq.s32.totalorder %v124, %v136
    %vm153 = vcmp.eq.s32.totalorder %v124, %v139
    %vm154 = vcmp.eq.s32.totalorder %v124, %v142
    %vm155 = vcmp.eq.s32.totalorder %v124, %v145
    %vm156 = vcmp.eq.s32.totalorder %v124, %v148
    %v157 = vsel %vm149, %v59, 0.0
    %v158 = vsel %vm150, %v60, 0.0
    %v159 = vsel %vm151, %v61, 0.0
    %v160 = vsel %vm152, %v62, 0.0
    %v161 = vsel %vm153, %v63, 0.0
    %v162 = vsel %vm154, %v64, 0.0
    %v163 = vsel %vm155, %v65, 0.0
    %v164 = vsel %vm156, %v66, 0.0
    %v165 = vsel %vm34, %v157, 0.0
    %166 = vadd.xlane.f32.xlu0 %v165
    %v167 = vpop.xlane.xlu0 %166
    %v168 = vsel %vm34, %v158, 0.0
    %169 = vadd.xlane.f32.xlu0 %v168
    %v170 = vpop.xlane.xlu0 %169
    %v171 = vsel %vm34, %v159, 0.0
    %172 = vadd.xlane.f32.xlu0 %v171
    %v173 = vpop.xlane.xlu0 %172
    %v174 = vsel %vm34, %v160, 0.0
    %175 = vadd.xlane.f32.xlu0 %v174
    %v176 = vpop.xlane.xlu0 %175
    %v177 = vsel %vm34, %v161, 0.0
    %178 = vadd.xlane.f32.xlu0 %v177
    %v179 = vpop.xlane.xlu0 %178
    %v180 = vsel %vm34, %v162, 0.0
    %181 = vadd.xlane.f32.xlu0 %v180
    %v182 = vpop.xlane.xlu0 %181
    %v183 = vsel %vm34, %v163, 0.0
    %184 = vadd.xlane.f32.xlu0 %v183
    %v185 = vpop.xlane.xlu0 %184
    %v186 = vsel %vm34, %v164, 0.0
    %187 = vadd.xlane.f32.xlu0 %v186
    %v188 = vpop.xlane.xlu0 %187
    %v189 = vsub.f32 %v108, %v167
    %v190 = vsub.f32 %v110, %v170
    %v191 = vsub.f32 %v112, %v173
    %v192 = vsub.f32 %v114, %v176
    %v193 = vsub.f32 %v116, %v179
    %v194 = vsub.f32 %v118, %v182
    %v195 = vsub.f32 %v120, %v185
    %v196 = vsub.f32 %v122, %v188
    %v197 = vlaneseq
    %v198 = vshrl.u32 %v197, 7
    %v199 = vadd.s32 %v198, 8
    %v200 = vadd.s32 %v198, 16
    %v201 = vadd.s32 %v198, 24
    %v202 = vadd.s32 %v198, 32
    %v203 = vadd.s32 %v198, 40
    %v204 = vadd.s32 %v198, 48
    %v205 = vadd.s32 %v198, 56
    %s206 = smul.u32 0, 64
    %v207 = vstv %s206
    %v208 = vadd.s32 %v198, %v207
    %v209 = vadd.s32 %v199, %v207
    %v210 = vadd.s32 %v200, %v207
    %v211 = vadd.s32 %v201, %v207
    %v212 = vadd.s32 %v202, %v207
    %v213 = vadd.s32 %v203, %v207
    %v214 = vadd.s32 %v204, %v207
    %v215 = vadd.s32 %v205, %v207
    %vm216 = vcmp.lt.s32.totalorder %v208, 64
    %vm217 = vcmp.lt.s32.totalorder %v209, 64
    %vm218 = vcmp.lt.s32.totalorder %v210, 64
    %vm219 = vcmp.lt.s32.totalorder %v211, 64
    %vm220 = vcmp.lt.s32.totalorder %v212, 64
    %vm221 = vcmp.lt.s32.totalorder %v213, 64
    %vm222 = vcmp.lt.s32.totalorder %v214, 64
    %vm223 = vcmp.lt.s32.totalorder %v215, 64
    %v224 = vsel %vm216, %v189, 0.0
    %v225 = vsel %vm217, %v190, 0.0
    %v226 = vsel %vm218, %v191, 0.0
    %v227 = vsel %vm219, %v192, 0.0
    %v228 = vsel %vm220, %v193, 0.0
    %v229 = vsel %vm221, %v194, 0.0
    %v230 = vsel %vm222, %v195, 0.0
    %v231 = vsel %vm223, %v196, 0.0
    %s232 = sld [smem:[#allocation2]]
    %vm233 = vcmask 7168
    %v234 = vsel %vm233, %v224, 0.0
    %v235 = vsel %vm233, %v225, 0.0
    %v236 = vadd.f32 %v234, %v235
    %v237 = vsel %vm233, %v226, 0.0
    %v238 = vadd.f32 %v236, %v237
    %v239 = vsel %vm233, %v227, 0.0
    %v240 = vadd.f32 %v238, %v239
    %v241 = vsel %vm233, %v228, 0.0
    %v242 = vadd.f32 %v240, %v241
    %v243 = vsel %vm233, %v229, 0.0
    %v244 = vadd.f32 %v242, %v243
    %v245 = vsel %vm233, %v230, 0.0
    %v246 = vadd.f32 %v244, %v245
    %v247 = vsel %vm233, %v231, 0.0
    %v248 = vadd.f32 %v246, %v247
    %249 = vadd.xlane.f32.xlu0 %v248
    %v250 = vpop.xlane.xlu0 %249
    %v251 = vrot.slane %v250, 4
    %v252 = vadd.f32 %v250, %v251
    %v253 = vrot.slane %v252, 2
    %v254 = vadd.f32 %v252, %v253
    %v255 = vrot.slane %v254, 1
    %v256 = vadd.f32 %v254, %v255
    %s257 = vtos %v256
    %s258 = sadd.f32 %s232, %s257
    %s259 = scalar_lea.smem [#allocation2], 0
    %260 = sst [smem:[%s259]] %s258
    // Predicated region
    $region14: #{tpu_custom_call.1} parent=1 // pred_check
      %p261 = pneg %p12
    $region15: #{tpu_custom_call.1} parent=1 // pred_check_branch
      %263 = sbr.rel (%p261) target = $region17
    $region16: #{tpu_custom_call.1} parent=1 // pred_region
      %s264 = sld [smem:[#allocation2]]
      %s265 = smul.f32 %s264, 0.015625
      %s266 = ssub.f32 0.0, %s265
      %v267 = vstv %s266
      %v268 = vmul.f32 %v267, 1.442695
      %v269 = vpow.pop %v268
      %s270 = vtos %v269
      %s271 = ssub.f32 1.0, %s270
      %s272 = smul.f32 %s271, %s271
      %s273 = smul.f32 %s272, %s265
      %s274 = scalar_lea.smem [#allocation3], 0
      %275 = sst [smem:[%s274]] %s273
    $region17: #{tpu_custom_call.1} parent=1 // pred_fallthru
      _
    // Predicated region
    $region18: #{tpu_custom_call.1} parent=1 // pred_check
      _
    $region19: #{tpu_custom_call.1} parent=1 // pred_check_branch
      %277 = sbr.rel (0) target = $region21
    $region20: #{tpu_custom_call.1} parent=1 // pred_region
      %s279 = ssub.s32 16, 16
      %280 = vsyncadd [#allocation4], %s279
      %283 = dma.smem_to_hbm [#allocation3], 16, %s2, [#allocation4]
    $region21: #{tpu_custom_call.1} parent=1 // pred_fallthru
      _
    // Predicated region
    $region22: #{tpu_custom_call.1} parent=1 // pred_check
      _
    $region23: #{tpu_custom_call.1} parent=1 // pred_check_branch
      %285 = sbr.rel (0) target = $region25
    $region24: #{tpu_custom_call.1} parent=1 // pred_region
      %286 = dma.done [#allocation4], 16
    $region25: #{tpu_custom_call.1} parent=1 // pred_fallthru
      _
    %287 = sfence
    %288 = vsyncpa [#allocation4], 1

</llo_original>
